<compile_context>
chip_gen: v7x
topology: tpu7x:2x2x1
jax: 0.10.0
libtpu: 0.0.40
codegen_flags: <defaults>
</compile_context>

<pallas_src>
from functools import partial

import jax
import jax.numpy as jnp
from jax import lax
from jax.experimental import pallas as pl
from jax.experimental.pallas import tpu as pltpu


# ----------------------------------------------------------------------------
# GeM pooling kernel
# ----------------------------------------------------------------------------
def _gem_kernel(p_ref, x_ref, o_ref, acc_ref, *, eps, hw):
    # p_ref:   SMEM (1,) f32      -- learnable GeM exponent.
    # x_ref:   VMEM (tm, hw_blk)  -- one (row-block, hw-block) tile of (N*C, H*W).
    # o_ref:   VMEM (1, 8, tm)    -- pooled row block, lane-dense (tm on lanes).
    # acc_ref: VMEM (1, tm) f32   -- running sum of x^p over the hw axis.
    k = pl.program_id(1)
    nhw = pl.num_programs(1)
    hw_blk = x_ref.shape[1]

    @pl.when(k == 0)
    def _():
        acc_ref[...] = jnp.zeros_like(acc_ref)

    p = p_ref[0]
    x = x_ref[...].astype(jnp.float32)          # bf16 HBM residency OK; f32 compute
    x = jnp.maximum(x, eps)                     # clamp(min=eps)  -> x > 0
    xp = jnp.exp(p * jnp.log(x))                # x ** p (dynamic exponent via EUP)

    # Mask lanes beyond the true H*W (partial last hw block reads padding).
    lane = lax.broadcasted_iota(jnp.int32, (1, hw_blk), 1)
    valid = (k * hw_blk + lane) < hw
    xp = jnp.where(valid, xp, 0.0)

    # Lane reduction on the MXU: ones(1, hw_blk) . xp(tm, hw_blk)^T -> (1, tm).
    # This both offloads the reduce from the XLU and yields a lane-dense row
    # so the final store is an unmasked, full-lane vst.
    ones_row = jnp.ones((1, hw_blk), jnp.float32)
    part = lax.dot_general(
        ones_row, xp,
        dimension_numbers=(((1,), (1,)), ((), ())),
        precision=lax.Precision.HIGHEST,
        preferred_element_type=jnp.float32,
    )
    acc_ref[...] += part

    @pl.when(k == nhw - 1)
    def _():
        inv_p = 1.0 / p                          # scalar; per-row divide -> multiply
        mean = acc_ref[...] * (1.0 / hw)         # divide by TRUE H*W, not block width
        row = jnp.exp(jnp.log(mean) * inv_p)     # mean ** (1/p), shape (1, tm)
        o_ref[...] = jnp.broadcast_to(row[:, None, :], o_ref.shape).astype(o_ref.dtype)


def gem_pallas(x, p, eps=1e-6, *, hw_block=512):
    """GeM pooling. x: (N, C, H, W) f32/bf16, p: (1,) f32 (>0). Returns (N, C, 1, 1)."""
    N, C, H, W = x.shape
    rows, hw = N * C, H * W
    x2 = x.reshape(rows, hw)                     # free reshape; spatial on lanes

    # --- hw (lane / reduction) tiling: single full block if small, else 128-multiples.
    if hw <= hw_block:
        hw_blk = hw                              # block == full array dim -> legal
    else:
        hw_blk = max(128, (hw_block // 128) * 128)
    n_hw = pl.cdiv(hw, hw_blk)

    # --- row tiling sized so the double-buffered input tile fits every generation
    #     (v7x has only 64 MiB physical VMEM; keep 2 * tm * lanes * itemsize small).
    lane_pad = ((hw_blk + 127) // 128) * 128
    itemsize = jnp.dtype(x.dtype).itemsize
    budget = 12 * 1024 * 1024                    # double-buffered input budget
    tm = min(budget // (2 * lane_pad * itemsize), 2048, rows)
    tm = max(8, (int(tm) // 8) * 8)              # multiple of 8 sublanes
    n_rows = pl.cdiv(rows, tm)                   # tail row block read-padded, discarded

    dbuf_bytes = 2 * tm * lane_pad * itemsize
    vmem_limit = int(min(60 * 2**20, max(16 * 2**20, 4 * dbuf_bytes)))

    out = pl.pallas_call(
        partial(_gem_kernel, eps=eps, hw=hw),
        out_shape=jax.ShapeDtypeStruct((n_rows, 8, tm), x.dtype),
        grid=(n_rows, n_hw),
        in_specs=[
            pl.BlockSpec(memory_space=pltpu.MemorySpace.SMEM),      # p scalar
            pl.BlockSpec((tm, hw_blk), lambda i, k: (i, k)),        # x tile
        ],
        # Output block revisited across the reduction axis; written at k == last.
        out_specs=pl.BlockSpec((1, 8, tm), lambda i, k: (i, 0, 0)),
        scratch_shapes=[pltpu.VMEM((1, tm), jnp.float32)],
        compiler_params=pltpu.CompilerParams(
            dimension_semantics=("parallel", "arbitrary"),
            vmem_limit_bytes=vmem_limit,
        ),
    )(p, x2)

    # Lane-dense output: take sublane 0 of each row block, drop row padding.
    pooled = out[:, 0, :].reshape(n_rows * tm)[:rows]
    return pooled.reshape(N, C, 1, 1)


# ----------------------------------------------------------------------------
# Binary classification head: nn.Linear(num_ftrs, 1)
# ----------------------------------------------------------------------------
def _binary_head_kernel(b_ref, x_ref, w_ref, o_ref):
    # x: (N, D), w: (1, D), b: (1,) SMEM -> logits (N, 1)
    x = x_ref[...].astype(jnp.float32)
    w = w_ref[...].astype(jnp.float32)
    logit = jnp.sum(x * w, axis=-1, keepdims=True) + b_ref[0]
    o_ref[...] = logit.astype(o_ref.dtype)


def binary_head_pallas(feats, weight, bias):
    """feats: (N, D), weight: (1, D), bias: (1,). Returns (N, 1) logits."""
    N, D = feats.shape
    return pl.pallas_call(
        _binary_head_kernel,
        out_shape=jax.ShapeDtypeStruct((N, 1), feats.dtype),
        grid=(1,),
        in_specs=[
            pl.BlockSpec(memory_space=pltpu.MemorySpace.SMEM),
            pl.BlockSpec((N, D), lambda i: (0, 0)),
            pl.BlockSpec((1, D), lambda i: (0, 0)),
        ],
        out_specs=pl.BlockSpec((N, 1), lambda i: (0, 0)),
    )(bias, feats, weight)


# ----------------------------------------------------------------------------
if __name__ == "__main__":
    key = jax.random.PRNGKey(0)
    k1, k2, k3, k4 = jax.random.split(key, 4)

    eps = 1e-6
    p = jnp.ones((1,), dtype=jnp.float32) * 3.0      # nn.Parameter(torch.ones(1) * 3)
    assert float(p[0]) > 0.0                         # exp(p*log(x)) requires p > 0

    def gem_ref(x, p, eps):
        xf = x.astype(jnp.float32)
        return jnp.mean(jnp.clip(xf, min=eps) ** p[0],
                        axis=(-2, -1), keepdims=True) ** (1.0 / p[0])

    # 1) Small shape, single hw block fast path.
    x1 = jax.random.normal(k1, (2, 4, 16, 16), dtype=jnp.float32)
    o1 = jax.block_until_ready(gem_pallas(x1, p, eps))
    assert o1.shape == (2, 4, 1, 1)
    assert jnp.allclose(o1, gem_ref(x1, p, eps), rtol=2e-5, atol=1e-6)

    # 2) Ragged shape exercising row-tail, hw reduction axis and lane masking
    #    (rows=10 not a multiple of 8, hw=196 like DeiT 14x14, hw_block=128).
    x2 = jax.random.normal(k2, (2, 5, 14, 14), dtype=jnp.float32)
    o2 = jax.block_until_ready(gem_pallas(x2, p, eps, hw_block=128))
    assert o2.shape == (2, 5, 1, 1)
    assert jnp.allclose(o2, gem_ref(x2, p, eps), rtol=2e-5, atol=1e-6)

    # 3) bf16 HBM residency (halves memory traffic; f32 compute inside kernel).
    x3 = x1.astype(jnp.bfloat16)
    o3 = jax.block_until_ready(gem_pallas(x3, p, eps))
    assert jnp.allclose(o3.astype(jnp.float32), gem_ref(x3, p, eps),
                        rtol=5e-3, atol=5e-3)

    # 4) Binary classification head on pooled/backbone features.
    feats = jax.random.normal(k3, (2, 32), dtype=jnp.float32)
    w = jax.random.normal(k4, (1, 32), dtype=jnp.float32) * 0.1
    b = jnp.zeros((1,), dtype=jnp.float32)
    logits = jax.block_until_ready(binary_head_pallas(feats, w, b))
    assert logits.shape == (2, 1)
    assert jnp.allclose(logits, feats @ w.T + b, rtol=1e-5, atol=1e-6)

    print("KERNEL_OK")
</pallas_src>

<mosaic_0001>
module attributes {stable_mosaic.version = 11 : i64} {
  func.func @_gem_kernel(%arg0: i32, %arg1: i32, %arg2: memref<1xf32, #tpu.memory_space<smem>>, %arg3: memref<8x256xf32, #tpu.memory_space<vmem>>, %arg4: memref<1x8x8xf32, #tpu.memory_space<vmem>>, %arg5: memref<1x8xf32, #tpu.memory_space<vmem>>) attributes {dimension_semantics = [#tpu.dimension_semantics<parallel>, #tpu.dimension_semantics<arbitrary>], iteration_bounds = array<i64: 1, 1>, scalar_prefetch = 0 : i64, scratch_operands = 1 : i64, tpu.core_type = #tpu.core_type<tc>, window_params = [{transform_indices = @transform_0, window_bounds = array<i64: 1>}, {transform_indices = @transform_1, window_bounds = array<i64: 8, 256>}, {transform_indices = @transform_2, window_bounds = array<i64: 1, 8, 8>}]} {
    %c0_i32 = arith.constant 0 : i32
    %0 = arith.cmpi eq, %arg1, %c0_i32 : i32
    %1 = arith.extui %0 : i1 to i32
    %c0_i32_0 = arith.constant 0 : i32
    %2 = arith.cmpi ne, %1, %c0_i32_0 : i32
    scf.if %2 {
      %cst_13 = arith.constant 0.000000e+00 : f32
      %29 = vector.broadcast %cst_13 : f32 to vector<1x8xf32>
      %c0_14 = arith.constant 0 : index
      %c0_15 = arith.constant 0 : index
      %30 = vector.load %arg5[%c0_14, %c0_15] : memref<1x8xf32, #tpu.memory_space<vmem>>, vector<1x8xf32>
      tpu.vector_store %arg5[%c0_14, %c0_15], %29 {strides = array<i32>} : memref<1x8xf32, #tpu.memory_space<vmem>>, vector<1x8xf32>,
    } else {
    }
    %c0 = arith.constant 0 : index
    %3 = memref.load %arg2[%c0] : memref<1xf32, #tpu.memory_space<smem>>
    %c0_1 = arith.constant 0 : index
    %c0_2 = arith.constant 0 : index
    %4 = vector.load %arg3[%c0_1, %c0_2] : memref<8x256xf32, #tpu.memory_space<vmem>>, vector<8x256xf32>
    %cst = arith.constant 9.99999997E-7 : f32
    %5 = vector.broadcast %cst : f32 to vector<8x256xf32>
    %6 = arith.maximumf %4, %5 : vector<8x256xf32>
    %7 = math.log %6 : vector<8x256xf32>
    %8 = vector.broadcast %3 : f32 to vector<8x256xf32>
    %9 = arith.mulf %8, %7 : vector<8x256xf32>
    %10 = math.exp %9 : vector<8x256xf32>
    %11 = tpu.iota {dimensions = array<i32: 1>} : vector<1x256xi32>
    %c256_i32 = arith.constant 256 : i32
    %12 = arith.muli %arg1, %c256_i32 : i32
    %13 = vector.broadcast %12 : i32 to vector<1x256xi32>
    %14 = arith.addi %13, %11 : vector<1x256xi32>
    %c256_i32_3 = arith.constant 256 : i32
    %15 = vector.broadcast %c256_i32_3 : i32 to vector<1x256xi32>
    %16 = arith.cmpi slt, %14, %15 : vector<1x256xi32>
    %cst_4 = arith.constant 0.000000e+00 : f32
    %17 = vector.shape_cast %16 : vector<1x256xi1> to vector<1x256xi1>
    %18 = vector.broadcast %17 : vector<1x256xi1> to vector<8x256xi1>
    %19 = vector.broadcast %cst_4 : f32 to vector<8x256xf32>
    %20 = arith.select %18, %10, %19 : vector<8x256xi1>, vector<8x256xf32>
    %cst_5 = arith.constant 1.000000e+00 : f32
    %21 = vector.broadcast %cst_5 : f32 to vector<1x256xf32>
    %cst_6 = arith.constant dense<0.000000e+00> : vector<1x8xf32>
    %22 = tpu.matmul %21, %20, %cst_6 {dimension_numbers = #tpu.dot_dimension_numbers<[1], [1], [0], [0], [0, 0, 1, 0], [], []>, precision = #tpu.contract_precision<fp32>} : vector<1x256xf32>, vector<8x256xf32>, vector<1x8xf32> -> vector<1x8xf32>
    %c0_7 = arith.constant 0 : index
    %c0_8 = arith.constant 0 : index
    %23 = vector.load %arg5[%c0_7, %c0_8] : memref<1x8xf32, #tpu.memory_space<vmem>>, vector<1x8xf32>
    %24 = arith.addf %23, %22 : vector<1x8xf32>
    %c0_9 = arith.constant 0 : index
    %c0_10 = arith.constant 0 : index
    %25 = vector.load %arg5[%c0_9, %c0_10] : memref<1x8xf32, #tpu.memory_space<vmem>>, vector<1x8xf32>
    tpu.vector_store %arg5[%c0_9, %c0_10], %24 {strides = array<i32>} : memref<1x8xf32, #tpu.memory_space<vmem>>, vector<1x8xf32>,
    %c0_i32_11 = arith.constant 0 : i32
    %26 = arith.cmpi eq, %arg1, %c0_i32_11 : i32
    %27 = arith.extui %26 : i1 to i32
    %c0_i32_12 = arith.constant 0 : i32
    %28 = arith.cmpi ne, %27, %c0_i32_12 : i32
    scf.if %28 {
      %cst_13 = arith.constant 1.000000e+00 : f32
      %29 = arith.divf %cst_13, %3 : f32
      %c0_14 = arith.constant 0 : index
      %c0_15 = arith.constant 0 : index
      %30 = vector.load %arg5[%c0_14, %c0_15] : memref<1x8xf32, #tpu.memory_space<vmem>>, vector<1x8xf32>
      %cst_16 = arith.constant 3.906250e-03 : f32
      %31 = vector.broadcast %cst_16 : f32 to vector<1x8xf32>
      %32 = arith.mulf %30, %31 : vector<1x8xf32>
      %33 = math.log %32 : vector<1x8xf32>
      %34 = vector.broadcast %29 : f32 to vector<1x8xf32>
      %35 = arith.mulf %33, %34 : vector<1x8xf32>
      %36 = math.exp %35 : vector<1x8xf32>
      %37 = vector.shape_cast %36 : vector<1x8xf32> to vector<1x1x8xf32>
      %38 = vector.shape_cast %37 : vector<1x1x8xf32> to vector<1x1x8xf32>
      %39 = vector.broadcast %38 : vector<1x1x8xf32> to vector<1x8x8xf32>
      %c0_17 = arith.constant 0 : index
      %c0_18 = arith.constant 0 : index
      %c0_19 = arith.constant 0 : index
      %40 = vector.load %arg4[%c0_17, %c0_18, %c0_19] : memref<1x8x8xf32, #tpu.memory_space<vmem>>, vector<1x8x8xf32>
      tpu.vector_store %arg4[%c0_17, %c0_18, %c0_19], %39 {strides = array<i32>} : memref<1x8x8xf32, #tpu.memory_space<vmem>>, vector<1x8x8xf32>,
    } else {
    }
    return
  }
  func.func @transform_0(%arg0: i32, %arg1: i32) -> i32 {
    %c0_i32 = arith.constant 0 : i32
    %c0_i32_0 = arith.constant 0 : i32
    return %c0_i32 : i32
  }
  func.func @transform_1(%arg0: i32, %arg1: i32) -> (i32, i32) {
    %c0_i32 = arith.constant 0 : i32
    return %arg0, %arg1 : i32, i32
  }
  func.func @transform_2(%arg0: i32, %arg1: i32) -> (i32, i32, i32) {
    %c0_i32 = arith.constant 0 : i32
    %c0_i32_0 = arith.constant 0 : i32
    %c0_i32_1 = arith.constant 0 : i32
    return %arg0, %c0_i32, %c0_i32_0 : i32, i32, i32
  }
}

</mosaic_0001>

<llo_original>
// kernel: tpu_custom_call.1
$region0: #{tpu_custom_call.1}
  #allocation0 [shape = 'u32[]', space=smem, size = 0x4, offset = 0x4, fixed_abs, tag = 'smem constant byte address 0x4 - core index']
  #allocation1 [shape = 'u32[144,128]{1,0:T(1,128)}', space=vmem, size = 0x12000, scoped, tag = 'internal scratch']
  #allocation2 [shape = 'f32[1,8]{1,0:T(1,128)}', space=vmem, size = 0x200, scoped, tag = 'scratch operand']
  #allocation3 [shape = 'f32[1]{0:T(128)S(6)}', space=smem, size = 0x200, scoped, tag = 'scoped memory for tpu_custom_call.1']
  %s0 = inlined_call_operand.<no memory space> [shape: f32[1], index: 0, kind: input, shape index: {}]
  %s1 = inlined_call_operand.hbm [shape: f32[8,256], index: 1, kind: input, shape index: {}]
  %s2 = inlined_call_operand.hbm [shape: f32[1,8,8], index: 2, kind: output, shape index: {}]
  %s3 = sld [smem:[#allocation0]]
  $region30: #{tpu_custom_call.1} parent=0
    _
  %s5 = ssub.s32 1, %s3
  %s6 = scalar_select 0, %s5, %s3
  %7 = sst [smem:[#allocation3]] %s0
  $region1: #{tpu_custom_call.1} parent=0
    #allocation4 [shape = 'u8[8192]{0}', space=vmem, size = 0x2000, scoped, tag = 'input window, operand 1, single buffered']
    #allocation5 [shape = 's32[1]{0}', space=sflag, size = 0x4, scoped, tag = 'scoped memory for tpu_custom_call.1']
    #allocation6 [shape = 's32[1]{0}', space=sflag, size = 0x4, scoped, tag = 'scoped memory for tpu_custom_call.1']
    #allocation7 [shape = 'u8[4096]{0}', space=vmem, size = 0x1000, scoped, tag = 'output window, operand 0, single buffered']
    %8 = vsyncpa [#allocation5], 0
    %9 = vsyncpa [#allocation6], 0
    // Predicated region
    $region2: #{tpu_custom_call.1} parent=1 // pred_check
      _
    $region3: #{tpu_custom_call.1} parent=1 // pred_check_branch
      %11 = sbr.rel (0) target = $region5
    $region4: #{tpu_custom_call.1} parent=1 // pred_region
      _
    $region5: #{tpu_custom_call.1} parent=1 // pred_fallthru
      _
    // Predicated region
    $region6: #{tpu_custom_call.1} parent=1 // pred_check
      _
    $region7: #{tpu_custom_call.1} parent=1 // pred_check_branch
      %13 = sbr.rel (0) target = $region9
    $region8: #{tpu_custom_call.1} parent=1 // pred_region
      %s15 = ssub.s32 256, 256
      %16 = vsyncadd [#allocation5], %s15
      %s18 = sshll.u32 [#allocation4], 4
      %s19 = int_to_ptr.vmem [resolvable:$true] %s18
      %21 = dma.hbm_to_vmem [thread:$0]  %s1, 256, %s19, [#allocation5]
    $region9: #{tpu_custom_call.1} parent=1 // pred_fallthru
      _
    // Predicated region
    $region10: #{tpu_custom_call.1} parent=1 // pred_check
      _
    $region11: #{tpu_custom_call.1} parent=1 // pred_check_branch
      %23 = sbr.rel (0) target = $region13
    $region12: #{tpu_custom_call.1} parent=1 // pred_region
      %24 = dma.done [#allocation5], 256
    $region13: #{tpu_custom_call.1} parent=1 // pred_fallthru
      _
    %p25 = scmp.eq.s32.totalorder 0, 0
    // Predicated region
    $region14: #{tpu_custom_call.1} parent=1 // pred_check
      %p26 = pneg %p25
    $region15: #{tpu_custom_call.1} parent=1 // pred_check_branch
      %28 = sbr.rel (%p26) target = $region17
    $region16: #{tpu_custom_call.1} parent=1 // pred_region
      %vm29 = vcmask 57344
      %30 = vst.msk [vmem:[#allocation2] sm:$0x1] %vm29, 0.0
    $region17: #{tpu_custom_call.1} parent=1 // pred_fallthru
      _
    %s31 = sld [smem:[#allocation3]]
    %v32 = vld [vmem:[#allocation4] sm:$0xff]
    %v33 = vld [vmem:[#allocation4 + $0x8] sm:$0xff]
    %v34 = vmax.f32 %v32, 1e-06
    %v35 = vmax.f32 %v33, 1e-06
    %v36 = vlog2.pop %v34
    %v37 = vmul.f32 %v36, 0.6931472
    %v38 = vlog2.pop %v35
    %v39 = vmul.f32 %v38, 0.6931472
    %v40 = vstv %s31
    %v41 = vmul.f32 %v40, %v37
    %v42 = vmul.f32 %v40, %v39
    %v43 = vmul.f32 %v41, 1.442695
    %v44 = vpow.pop %v43
    %v45 = vmul.f32 %v42, 1.442695
    %v46 = vpow.pop %v45
    %v47 = vlaneseq
    %v48 = vand.u32 %v47, 127
    %v49 = vadd.s32 %v48, 128
    %s50 = smul.u32 0, 256
    %v51 = vstv %s50
    %v52 = vadd.s32 %v51, %v48
    %v53 = vadd.s32 %v51, %v49
    %vm54 = vcmp.lt.s32.totalorder %v52, 256
    %vm55 = vcmp.lt.s32.totalorder %v53, 256
    %v56 = vsel %vm54, 1, 0
    %v57 = vsel %vm55, 1, 0
    %vm58 = vcmp.eq.s32.totalorder %v56, 1
    %vm59 = vcmp.eq.s32.totalorder %v57, 1
    %v60 = vsel %vm58, %v44, 0.0
    %v61 = vsel %vm59, %v46, 0.0
    %v62 = vand.u32 %v61, 4294901760
    %63 = vmatprep.subr.mxu0 %v62
    %v64 = vand.u32 %v60, 4294901760
    %65 = vmatpush1.xpose.msra.mxu0 %v64
    %66 = vmatprep.subr.mxu0 0.0
    %67 = vmatpush1.xpose.msra.mxu0 0.0
    %68 = vmatprep.subr.mxu0 0.0
    %69 = vmatpush1.xpose.msra.mxu0 0.0
    %70 = vmatprep.subr.mxu0 0.0
    %71 = vmatpush1.xpose.msra.mxu0 0.0
    %72 = vmatprep.subr.mxu0 0.0
    %73 = vmatpush1.xpose.msra.mxu0 0.0
    %74 = vmatprep.subr.mxu0 0.0
    %75 = vmatpush1.xpose.msra.mxu0 0.0
    %76 = vmatprep.subr.mxu0 0.0
    %77 = vmatpush1.xpose.msra.mxu0 0.0
    %78 = vmatprep.subr.mxu0 0.0
    %79 = vmatpush1.xpose.msra.mxu0 0.0
    %80 = vmatprep.subr.mxu0 0.0
    %81 = vmatpush1.xpose.msra.mxu0 0.0
    %82 = vmatprep.subr.mxu0 0.0
    %83 = vmatpush1.xpose.msra.mxu0 0.0
    %84 = vmatprep.subr.mxu0 0.0
    %85 = vmatpush1.xpose.msra.mxu0 0.0
    %86 = vmatprep.subr.mxu0 0.0
    %87 = vmatpush1.xpose.msra.mxu0 0.0
    %88 = vmatprep.subr.mxu0 0.0
    %89 = vmatpush1.xpose.msra.mxu0 0.0
    %90 = vmatprep.subr.mxu0 0.0
    %91 = vmatpush1.xpose.msra.mxu0 0.0
    %92 = vmatprep.subr.mxu0 0.0
    %93 = vmatpush1.xpose.msra.mxu0 0.0
    %94 = vmatprep.subr.mxu0 0.0
    %95 = vmatpush1.xpose.msra.mxu0 0.0
    %96 = vmatprep.subr.mxu0 0.0
    %97 = vmatpush1.xpose.msra.mxu0 0.0
    %98 = vmatprep.subr.mxu0 0.0
    %99 = vmatpush1.xpose.msra.mxu0 0.0
    %100 = vmatprep.subr.mxu0 0.0
    %101 = vmatpush1.xpose.msra.mxu0 0.0
    %102 = vmatprep.subr.mxu0 0.0
    %103 = vmatpush1.xpose.msra.mxu0 0.0
    %104 = vmatprep.subr.mxu0 0.0
    %105 = vmatpush1.xpose.msra.mxu0 0.0
    %106 = vmatprep.subr.mxu0 0.0
    %107 = vmatpush1.xpose.msra.mxu0 0.0
    %108 = vmatprep.subr.mxu0 0.0
    %109 = vmatpush1.xpose.msra.mxu0 0.0
    %110 = vmatprep.subr.mxu0 0.0
    %111 = vmatpush1.xpose.msra.mxu0 0.0
    %112 = vmatprep.subr.mxu0 0.0
    %113 = vmatpush1.xpose.msra.mxu0 0.0
    %114 = vmatprep.subr.mxu0 0.0
    %115 = vmatpush1.xpose.msra.mxu0 0.0
    %116 = vmatprep.subr.mxu0 0.0
    %117 = vmatpush1.xpose.msra.mxu0 0.0
    %118 = vmatprep.subr.mxu0 0.0
    %119 = vmatpush1.xpose.msra.mxu0 0.0
    %120 = vmatprep.subr.mxu0 0.0
    %121 = vmatpush1.xpose.msra.mxu0 0.0
    %122 = vmatprep.subr.mxu0 0.0
    %123 = vmatpush1.xpose.msra.mxu0 0.0
    %124 = vmatprep.subr.mxu0 0.0
    %125 = vmatpush1.xpose.msra.mxu0 0.0
    %126 = vmatprep.subr.mxu0 0.0
    %127 = vmatpush1.xpose.msra.mxu0 0.0
    %128 = vmatprep.mubr.f32.mxu0 0.0
    %129 = vmatmul.mubr.f32.gmra.mrb[0].mxu0 0.0
    %v130 = vpop.f32.mrb[0].mxu0
    %v131 = vadd.f32 0.0, %v130
    %v132 = vpop.f32.mrb[0].mxu0
    %133 = vdwg.mxu0
    %v134 = vand.u32 %v61, 4294901760
    %v135 = vsub.f32 %v61, %v134
    %v136 = vand.u32 %v135, 4294901760
    %v137 = vsub.f32 %v135, %v136
    %v138 = vand.u32 %v137, 4294901760
    %139 = vmatprep.subr.mxu0 %v138
    %v140 = vand.u32 %v60, 4294901760
    %v141 = vsub.f32 %v60, %v140
    %v142 = vand.u32 %v141, 4294901760
    %v143 = vsub.f32 %v141, %v142
    %v144 = vand.u32 %v143, 4294901760
    %145 = vmatpush1.xpose.msra.mxu0 %v144
    %146 = vmatprep.subr.mxu0 0.0
    %147 = vmatpush1.xpose.msra.mxu0 0.0
    %148 = vmatprep.subr.mxu0 0.0
    %149 = vmatpush1.xpose.msra.mxu0 0.0
    %150 = vmatprep.subr.mxu0 0.0
    %151 = vmatpush1.xpose.msra.mxu0 0.0
    %152 = vmatprep.subr.mxu0 0.0
    %153 = vmatpush1.xpose.msra.mxu0 0.0
    %154 = vmatprep.subr.mxu0 0.0
    %155 = vmatpush1.xpose.msra.mxu0 0.0
    %156 = vmatprep.subr.mxu0 0.0
    %157 = vmatpush1.xpose.msra.mxu0 0.0
    %158 = vmatprep.subr.mxu0 0.0
    %159 = vmatpush1.xpose.msra.mxu0 0.0
    %160 = vmatprep.subr.mxu0 0.0
    %161 = vmatpush1.xpose.msra.mxu0 0.0
    %162 = vmatprep.subr.mxu0 0.0
    %163 = vmatpush1.xpose.msra.mxu0 0.0
    %164 = vmatprep.subr.mxu0 0.0
    %165 = vmatpush1.xpose.msra.mxu0 0.0
    %166 = vmatprep.subr.mxu0 0.0
    %167 = vmatpush1.xpose.msra.mxu0 0.0
    %168 = vmatprep.subr.mxu0 0.0
    %169 = vmatpush1.xpose.msra.mxu0 0.0
    %170 = vmatprep.subr.mxu0 0.0
    %171 = vmatpush1.xpose.msra.mxu0 0.0
    %172 = vmatprep.subr.mxu0 0.0
    %173 = vmatpush1.xpose.msra.mxu0 0.0
    %174 = vmatprep.subr.mxu0 0.0
    %175 = vmatpush1.xpose.msra.mxu0 0.0
    %176 = vmatprep.subr.mxu0 0.0
    %177 = vmatpush1.xpose.msra.mxu0 0.0
    %178 = vmatprep.subr.mxu0 0.0
    %179 = vmatpush1.xpose.msra.mxu0 0.0
    %180 = vmatprep.subr.mxu0 0.0
    %181 = vmatpush1.xpose.msra.mxu0 0.0
    %182 = vmatprep.subr.mxu0 0.0
    %183 = vmatpush1.xpose.msra.mxu0 0.0
    %184 = vmatprep.subr.mxu0 0.0
    %185 = vmatpush1.xpose.msra.mxu0 0.0
    %186 = vmatprep.subr.mxu0 0.0
    %187 = vmatpush1.xpose.msra.mxu0 0.0
    %188 = vmatprep.subr.mxu0 0.0
    %189 = vmatpush1.xpose.msra.mxu0 0.0
    %190 = vmatprep.subr.mxu0 0.0
    %191 = vmatpush1.xpose.msra.mxu0 0.0
    %192 = vmatprep.subr.mxu0 0.0
    %193 = vmatpush1.xpose.msra.mxu0 0.0
    %194 = vmatprep.subr.mxu0 0.0
    %195 = vmatpush1.xpose.msra.mxu0 0.0
    %196 = vmatprep.subr.mxu0 0.0
    %197 = vmatpush1.xpose.msra.mxu0 0.0
    %198 = vmatprep.subr.mxu0 0.0
    %199 = vmatpush1.xpose.msra.mxu0 0.0
    %200 = vmatprep.subr.mxu0 0.0
    %201 = vmatpush1.xpose.msra.mxu0 0.0
    %202 = vmatprep.subr.mxu0 0.0
    %203 = vmatpush1.xpose.msra.mxu0 0.0
    %204 = vmatprep.subr.mxu0 0.0
    %205 = vmatpush1.xpose.msra.mxu0 0.0
    %206 = vmatprep.subr.mxu0 0.0
    %207 = vmatpush1.xpose.msra.mxu0 0.0
    %208 = vmatprep.mubr.f32.mxu0 1.0
    %209 = vmatmul.mubr.f32.gmra.mrb[0].mxu0 1.0
    %v210 = vpop.f32.mrb[0].mxu0
    %v211 = vadd.f32 %v131, %v210
    %v212 = vpop.f32.mrb[0].mxu0
    %213 = vdwg.mxu0
    %v214 = vand.u32 %v61, 4294901760
    %v215 = vsub.f32 %v61, %v214
    %216 = vmatprep.subr.mxu0 %v215
    %v217 = vand.u32 %v60, 4294901760
    %v218 = vsub.f32 %v60, %v217
    %219 = vmatpush1.xpose.msra.mxu0 %v218
    %220 = vmatprep.subr.mxu0 0.0
    %221 = vmatpush1.xpose.msra.mxu0 0.0
    %222 = vmatprep.subr.mxu0 0.0
    %223 = vmatpush1.xpose.msra.mxu0 0.0
    %224 = vmatprep.subr.mxu0 0.0
    %225 = vmatpush1.xpose.msra.mxu0 0.0
    %226 = vmatprep.subr.mxu0 0.0
    %227 = vmatpush1.xpose.msra.mxu0 0.0
    %228 = vmatprep.subr.mxu0 0.0
    %229 = vmatpush1.xpose.msra.mxu0 0.0
    %230 = vmatprep.subr.mxu0 0.0
    %231 = vmatpush1.xpose.msra.mxu0 0.0
    %232 = vmatprep.subr.mxu0 0.0
    %233 = vmatpush1.xpose.msra.mxu0 0.0
    %234 = vmatprep.subr.mxu0 0.0
    %235 = vmatpush1.xpose.msra.mxu0 0.0
    %236 = vmatprep.subr.mxu0 0.0
    %237 = vmatpush1.xpose.msra.mxu0 0.0
    %238 = vmatprep.subr.mxu0 0.0
    %239 = vmatpush1.xpose.msra.mxu0 0.0
    %240 = vmatprep.subr.mxu0 0.0
    %241 = vmatpush1.xpose.msra.mxu0 0.0
    %242 = vmatprep.subr.mxu0 0.0
    %243 = vmatpush1.xpose.msra.mxu0 0.0
    %244 = vmatprep.subr.mxu0 0.0
    %245 = vmatpush1.xpose.msra.mxu0 0.0
    %246 = vmatprep.subr.mxu0 0.0
    %247 = vmatpush1.xpose.msra.mxu0 0.0
    %248 = vmatprep.subr.mxu0 0.0
    %249 = vmatpush1.xpose.msra.mxu0 0.0
    %250 = vmatprep.subr.mxu0 0.0
    %251 = vmatpush1.xpose.msra.mxu0 0.0
    %252 = vmatprep.subr.mxu0 0.0
    %253 = vmatpush1.xpose.msra.mxu0 0.0
    %254 = vmatprep.subr.mxu0 0.0
    %255 = vmatpush1.xpose.msra.mxu0 0.0
    %256 = vmatprep.subr.mxu0 0.0
    %257 = vmatpush1.xpose.msra.mxu0 0.0
    %258 = vmatprep.subr.mxu0 0.0
    %259 = vmatpush1.xpose.msra.mxu0 0.0
    %260 = vmatprep.subr.mxu0 0.0
    %261 = vmatpush1.xpose.msra.mxu0 0.0
    %262 = vmatprep.subr.mxu0 0.0
    %263 = vmatpush1.xpose.msra.mxu0 0.0
    %264 = vmatprep.subr.mxu0 0.0
    %265 = vmatpush1.xpose.msra.mxu0 0.0
    %266 = vmatprep.subr.mxu0 0.0
    %267 = vmatpush1.xpose.msra.mxu0 0.0
    %268 = vmatprep.subr.mxu0 0.0
    %269 = vmatpush1.xpose.msra.mxu0 0.0
    %270 = vmatprep.subr.mxu0 0.0
    %271 = vmatpush1.xpose.msra.mxu0 0.0
    %272 = vmatprep.subr.mxu0 0.0
    %273 = vmatpush1.xpose.msra.mxu0 0.0
    %274 = vmatprep.subr.mxu0 0.0
    %275 = vmatpush1.xpose.msra.mxu0 0.0
    %276 = vmatprep.subr.mxu0 0.0
    %277 = vmatpush1.xpose.msra.mxu0 0.0
    %278 = vmatprep.subr.mxu0 0.0
    %279 = vmatpush1.xpose.msra.mxu0 0.0
    %280 = vmatprep.subr.mxu0 0.0
    %281 = vmatpush1.xpose.msra.mxu0 0.0
    %282 = vmatprep.mubr.f32.mxu0 0.0
    %283 = vmatmul.mubr.f32.gmra.mrb[0].mxu0 0.0
    %v284 = vpop.f32.mrb[0].mxu0
    %v285 = vadd.f32 %v211, %v284
    %v286 = vpop.f32.mrb[0].mxu0
    %287 = vdwg.mxu0
    %v288 = vand.u32 %v61, 4294901760
    %289 = vmatprep.subr.mxu0 %v288
    %v290 = vand.u32 %v60, 4294901760
    %291 = vmatpush1.xpose.msra.mxu0 %v290
    %292 = vmatprep.subr.mxu0 0.0
    %293 = vmatpush1.xpose.msra.mxu0 0.0
    %294 = vmatprep.subr.mxu0 0.0
    %295 = vmatpush1.xpose.msra.mxu0 0.0
    %296 = vmatprep.subr.mxu0 0.0
    %297 = vmatpush1.xpose.msra.mxu0 0.0
    %298 = vmatprep.subr.mxu0 0.0
    %299 = vmatpush1.xpose.msra.mxu0 0.0
    %300 = vmatprep.subr.mxu0 0.0
    %301 = vmatpush1.xpose.msra.mxu0 0.0
    %302 = vmatprep.subr.mxu0 0.0
    %303 = vmatpush1.xpose.msra.mxu0 0.0
    %304 = vmatprep.subr.mxu0 0.0
    %305 = vmatpush1.xpose.msra.mxu0 0.0
    %306 = vmatprep.subr.mxu0 0.0
    %307 = vmatpush1.xpose.msra.mxu0 0.0
    %308 = vmatprep.subr.mxu0 0.0
    %309 = vmatpush1.xpose.msra.mxu0 0.0
    %310 = vmatprep.subr.mxu0 0.0
    %311 = vmatpush1.xpose.msra.mxu0 0.0
    %312 = vmatprep.subr.mxu0 0.0
    %313 = vmatpush1.xpose.msra.mxu0 0.0
    %314 = vmatprep.subr.mxu0 0.0
    %315 = vmatpush1.xpose.msra.mxu0 0.0
    %316 = vmatprep.subr.mxu0 0.0
    %317 = vmatpush1.xpose.msra.mxu0 0.0
    %318 = vmatprep.subr.mxu0 0.0
    %319 = vmatpush1.xpose.msra.mxu0 0.0
    %320 = vmatprep.subr.mxu0 0.0
    %321 = vmatpush1.xpose.msra.mxu0 0.0
    %322 = vmatprep.subr.mxu0 0.0
    %323 = vmatpush1.xpose.msra.mxu0 0.0
    %324 = vmatprep.subr.mxu0 0.0
    %325 = vmatpush1.xpose.msra.mxu0 0.0
    %326 = vmatprep.subr.mxu0 0.0
    %327 = vmatpush1.xpose.msra.mxu0 0.0
    %328 = vmatprep.subr.mxu0 0.0
    %329 = vmatpush1.xpose.msra.mxu0 0.0
    %330 = vmatprep.subr.mxu0 0.0
    %331 = vmatpush1.xpose.msra.mxu0 0.0
    %332 = vmatprep.subr.mxu0 0.0
    %333 = vmatpush1.xpose.msra.mxu0 0.0
    %334 = vmatprep.subr.mxu0 0.0
    %335 = vmatpush1.xpose.msra.mxu0 0.0
    %336 = vmatprep.subr.mxu0 0.0
    %337 = vmatpush1.xpose.msra.mxu0 0.0
    %338 = vmatprep.subr.mxu0 0.0
    %339 = vmatpush1.xpose.msra.mxu0 0.0
    %340 = vmatprep.subr.mxu0 0.0
    %341 = vmatpush1.xpose.msra.mxu0 0.0
    %342 = vmatprep.subr.mxu0 0.0
    %343 = vmatpush1.xpose.msra.mxu0 0.0
    %344 = vmatprep.subr.mxu0 0.0
    %345 = vmatpush1.xpose.msra.mxu0 0.0
    %346 = vmatprep.subr.mxu0 0.0
    %347 = vmatpush1.xpose.msra.mxu0 0.0
    %348 = vmatprep.subr.mxu0 0.0
    %349 = vmatpush1.xpose.msra.mxu0 0.0
    %350 = vmatprep.subr.mxu0 0.0
    %351 = vmatpush1.xpose.msra.mxu0 0.0
    %352 = vmatprep.subr.mxu0 0.0
    %353 = vmatpush1.xpose.msra.mxu0 0.0
    %354 = vmatprep.mubr.f32.mxu0 0.0
    %355 = vmatmul.mubr.f32.gmra.mrb[0].mxu0 0.0
    %v356 = vpop.f32.mrb[0].mxu0
    %v357 = vadd.f32 %v285, %v356
    %v358 = vpop.f32.mrb[0].mxu0
    %359 = vdwg.mxu0
    %v360 = vand.u32 %v61, 4294901760
    %v361 = vsub.f32 %v61, %v360
    %v362 = vand.u32 %v361, 4294901760
    %363 = vmatprep.subr.mxu0 %v362
    %v364 = vand.u32 %v60, 4294901760
    %v365 = vsub.f32 %v60, %v364
    %v366 = vand.u32 %v365, 4294901760
    %367 = vmatpush1.xpose.msra.mxu0 %v366
    %368 = vmatprep.subr.mxu0 0.0
    %369 = vmatpush1.xpose.msra.mxu0 0.0
    %370 = vmatprep.subr.mxu0 0.0
    %371 = vmatpush1.xpose.msra.mxu0 0.0
    %372 = vmatprep.subr.mxu0 0.0
    %373 = vmatpush1.xpose.msra.mxu0 0.0
    %374 = vmatprep.subr.mxu0 0.0
    %375 = vmatpush1.xpose.msra.mxu0 0.0
    %376 = vmatprep.subr.mxu0 0.0
    %377 = vmatpush1.xpose.msra.mxu0 0.0
    %378 = vmatprep.subr.mxu0 0.0
    %379 = vmatpush1.xpose.msra.mxu0 0.0
    %380 = vmatprep.subr.mxu0 0.0
    %381 = vmatpush1.xpose.msra.mxu0 0.0
    %382 = vmatprep.subr.mxu0 0.0
    %383 = vmatpush1.xpose.msra.mxu0 0.0
    %384 = vmatprep.subr.mxu0 0.0
    %385 = vmatpush1.xpose.msra.mxu0 0.0
    %386 = vmatprep.subr.mxu0 0.0
    %387 = vmatpush1.xpose.msra.mxu0 0.0
    %388 = vmatprep.subr.mxu0 0.0
    %389 = vmatpush1.xpose.msra.mxu0 0.0
    %390 = vmatprep.subr.mxu0 0.0
    %391 = vmatpush1.xpose.msra.mxu0 0.0
    %392 = vmatprep.subr.mxu0 0.0
    %393 = vmatpush1.xpose.msra.mxu0 0.0
    %394 = vmatprep.subr.mxu0 0.0
    %395 = vmatpush1.xpose.msra.mxu0 0.0
    %396 = vmatprep.subr.mxu0 0.0
    %397 = vmatpush1.xpose.msra.mxu0 0.0
    %398 = vmatprep.subr.mxu0 0.0
    %399 = vmatpush1.xpose.msra.mxu0 0.0
    %400 = vmatprep.subr.mxu0 0.0
    %401 = vmatpush1.xpose.msra.mxu0 0.0
    %402 = vmatprep.subr.mxu0 0.0
    %403 = vmatpush1.xpose.msra.mxu0 0.0
    %404 = vmatprep.subr.mxu0 0.0
    %405 = vmatpush1.xpose.msra.mxu0 0.0
    %406 = vmatprep.subr.mxu0 0.0
    %407 = vmatpush1.xpose.msra.mxu0 0.0
    %408 = vmatprep.subr.mxu0 0.0
    %409 = vmatpush1.xpose.msra.mxu0 0.0
    %410 = vmatprep.subr.mxu0 0.0
    %411 = vmatpush1.xpose.msra.mxu0 0.0
    %412 = vmatprep.subr.mxu0 0.0
    %413 = vmatpush1.xpose.msra.mxu0 0.0
    %414 = vmatprep.subr.mxu0 0.0
    %415 = vmatpush1.xpose.msra.mxu0 0.0
    %416 = vmatprep.subr.mxu0 0.0
    %417 = vmatpush1.xpose.msra.mxu0 0.0
    %418 = vmatprep.subr.mxu0 0.0
    %419 = vmatpush1.xpose.msra.mxu0 0.0
    %420 = vmatprep.subr.mxu0 0.0
    %421 = vmatpush1.xpose.msra.mxu0 0.0
    %422 = vmatprep.subr.mxu0 0.0
    %423 = vmatpush1.xpose.msra.mxu0 0.0
    %424 = vmatprep.subr.mxu0 0.0
    %425 = vmatpush1.xpose.msra.mxu0 0.0
    %426 = vmatprep.subr.mxu0 0.0
    %427 = vmatpush1.xpose.msra.mxu0 0.0
    %428 = vmatprep.subr.mxu0 0.0
    %429 = vmatpush1.xpose.msra.mxu0 0.0
    %430 = vmatprep.mubr.f32.mxu0 1.0
    %431 = vmatmul.mubr.f32.gmra.mrb[0].mxu0 1.0
    %v432 = vpop.f32.mrb[0].mxu0
    %v433 = vadd.f32 %v357, %v432
    %v434 = vpop.f32.mrb[0].mxu0
    %435 = vdwg.mxu0
    %v436 = vand.u32 %v61, 4294901760
    %437 = vmatprep.subr.mxu0 %v436
    %v438 = vand.u32 %v60, 4294901760
    %439 = vmatpush1.xpose.msra.mxu0 %v438
    %440 = vmatprep.subr.mxu0 0.0
    %441 = vmatpush1.xpose.msra.mxu0 0.0
    %442 = vmatprep.subr.mxu0 0.0
    %443 = vmatpush1.xpose.msra.mxu0 0.0
    %444 = vmatprep.subr.mxu0 0.0
    %445 = vmatpush1.xpose.msra.mxu0 0.0
    %446 = vmatprep.subr.mxu0 0.0
    %447 = vmatpush1.xpose.msra.mxu0 0.0
    %448 = vmatprep.subr.mxu0 0.0
    %449 = vmatpush1.xpose.msra.mxu0 0.0
    %450 = vmatprep.subr.mxu0 0.0
    %451 = vmatpush1.xpose.msra.mxu0 0.0
    %452 = vmatprep.subr.mxu0 0.0
    %453 = vmatpush1.xpose.msra.mxu0 0.0
    %454 = vmatprep.subr.mxu0 0.0
    %455 = vmatpush1.xpose.msra.mxu0 0.0
    %456 = vmatprep.subr.mxu0 0.0
    %457 = vmatpush1.xpose.msra.mxu0 0.0
    %458 = vmatprep.subr.mxu0 0.0
    %459 = vmatpush1.xpose.msra.mxu0 0.0
    %460 = vmatprep.subr.mxu0 0.0
    %461 = vmatpush1.xpose.msra.mxu0 0.0
    %462 = vmatprep.subr.mxu0 0.0
    %463 = vmatpush1.xpose.msra.mxu0 0.0
    %464 = vmatprep.subr.mxu0 0.0
    %465 = vmatpush1.xpose.msra.mxu0 0.0
    %466 = vmatprep.subr.mxu0 0.0
    %467 = vmatpush1.xpose.msra.mxu0 0.0
    %468 = vmatprep.subr.mxu0 0.0
    %469 = vmatpush1.xpose.msra.mxu0 0.0
    %470 = vmatprep.subr.mxu0 0.0
    %471 = vmatpush1.xpose.msra.mxu0 0.0
    %472 = vmatprep.subr.mxu0 0.0
    %473 = vmatpush1.xpose.msra.mxu0 0.0
    %474 = vmatprep.subr.mxu0 0.0
    %475 = vmatpush1.xpose.msra.mxu0 0.0
    %476 = vmatprep.subr.mxu0 0.0
    %477 = vmatpush1.xpose.msra.mxu0 0.0
    %478 = vmatprep.subr.mxu0 0.0
    %479 = vmatpush1.xpose.msra.mxu0 0.0
    %480 = vmatprep.subr.mxu0 0.0
    %481 = vmatpush1.xpose.msra.mxu0 0.0
    %482 = vmatprep.subr.mxu0 0.0
    %483 = vmatpush1.xpose.msra.mxu0 0.0
    %484 = vmatprep.subr.mxu0 0.0
    %485 = vmatpush1.xpose.msra.mxu0 0.0
    %486 = vmatprep.subr.mxu0 0.0
    %487 = vmatpush1.xpose.msra.mxu0 0.0
    %488 = vmatprep.subr.mxu0 0.0
    %489 = vmatpush1.xpose.msra.mxu0 0.0
    %490 = vmatprep.subr.mxu0 0.0
    %491 = vmatpush1.xpose.msra.mxu0 0.0
    %492 = vmatprep.subr.mxu0 0.0
    %493 = vmatpush1.xpose.msra.mxu0 0.0
    %494 = vmatprep.subr.mxu0 0.0
    %495 = vmatpush1.xpose.msra.mxu0 0.0
    %496 = vmatprep.subr.mxu0 0.0
    %497 = vmatpush1.xpose.msra.mxu0 0.0
    %498 = vmatprep.subr.mxu0 0.0
    %499 = vmatpush1.xpose.msra.mxu0 0.0
    %500 = vmatprep.subr.mxu0 0.0
    %501 = vmatpush1.xpose.msra.mxu0 0.0
    %502 = vmatprep.mubr.f32.mxu0 1.0
    %503 = vmatmul.mubr.f32.gmra.mrb[0].mxu0 1.0
    %v504 = vpop.f32.mrb[0].mxu0
    %v505 = vadd.f32 %v433, %v504
    %v506 = vpop.f32.mrb[0].mxu0
    %507 = vdwg.mxu0
    %v508 = vld [vmem:[#allocation2] sm:$0x1]
    %v509 = vadd.f32 %v508, %v505
    %vm510 = vcmask 57344
    %511 = vst.msk [vmem:[#allocation2] sm:$0x1] %vm510, %v509
    // Predicated region
    $region18: #{tpu_custom_call.1} parent=1 // pred_check
      %p512 = pneg %p25
    $region19: #{tpu_custom_call.1} parent=1 // pred_check_branch
      %514 = sbr.rel (%p512) target = $region21
    $region20: #{tpu_custom_call.1} parent=1 // pred_region
      %v515 = vstv %s31
      %v516 = vrcp.pop %v515
      %s517 = vtos %v516
      %v518 = vld [vmem:[#allocation2] sm:$0x1]
      %v519 = vmul.f32 %v518, 0.00390625
      %v520 = vlog2.pop %v519
      %v521 = vmul.f32 %v520, 0.6931472
      %v522 = vstv %s517
      %v523 = vmul.f32 %v521, %v522
      %v524 = vmul.f32 %v523, 1.442695
      %v525 = vpow.pop %v524
      %v527 = vlaneseq
      %v528 = vshrl.u32 %v527, 7
      %v529 = vsub.s32 0, %v528
      %v530 = vrot.slane %v525, %v529
      %vm532 = vcmask 64512
      %533 = vst.msk [vmem:[#allocation7] sm:$0xff] %vm532, %v530
    $region21: #{tpu_custom_call.1} parent=1 // pred_fallthru
      _
    // Predicated region
    $region22: #{tpu_custom_call.1} parent=1 // pred_check
      _
    $region23: #{tpu_custom_call.1} parent=1 // pred_check_branch
      %535 = sbr.rel (0) target = $region25
    $region24: #{tpu_custom_call.1} parent=1 // pred_region
      %s537 = ssub.s32 128, 128
      %538 = vsyncadd [#allocation6], %s537
      %s540 = sshll.u32 [#allocation7], 4
      %s541 = int_to_ptr.vmem [resolvable:$true] %s540
      %543 = dma.vmem_to_hbm [thread:$0]  %s541, 128, %s2, [#allocation6]
    $region25: #{tpu_custom_call.1} parent=1 // pred_fallthru
      _
    // Predicated region
    $region26: #{tpu_custom_call.1} parent=1 // pred_check
      _
    $region27: #{tpu_custom_call.1} parent=1 // pred_check_branch
      %545 = sbr.rel (0) target = $region29
    $region28: #{tpu_custom_call.1} parent=1 // pred_region
      %546 = dma.done [#allocation6], 128
    $region29: #{tpu_custom_call.1} parent=1 // pred_fallthru
      _
    %547 = vsyncpa [#allocation5], 1
    %548 = vsyncpa [#allocation6], 1

</llo_original>
